<compile_context>
chip_gen: v5e
topology: v5e:2x2
jax: 0.10.0
libtpu: 0.0.40
codegen_flags: <defaults>
</compile_context>

<pallas_src>
import jax
import jax.numpy as jnp
from jax import lax
from jax.experimental import pallas as pl
from jax.experimental.pallas import tpu as pltpu


def _additive_attn_kernel(q_ref,     # VMEM (tb, Q, Dq) f32
                          k_ref,     # VMEM (tb, K, Dk) f32
                          v_ref,     # VMEM (tb, K, Dv) f32
                          lens_ref,  # VMEM (tb, 1) int32
                          wq_ref,    # VMEM (Dq, H) f32
                          wk_ref,    # VMEM (Dk, H) f32
                          wv_ref,    # VMEM (1, H) f32
                          out_ref):  # VMEM (tb, Q, Dv) f32
    tb, Q, Dq = q_ref.shape
    _, K, Dk = k_ref.shape
    H = wq_ref.shape[1]

    # Tall-LHS projections on the MXU: fold the tile's batches into rows.
    # Reshapes below only split/merge leading dims (lane dim H is preserved).
    qp = jnp.dot(q_ref[...].reshape(tb * Q, Dq), wq_ref[...],
                 preferred_element_type=jnp.float32).reshape(tb, Q, 1, H)
    kp = jnp.dot(k_ref[...].reshape(tb * K, Dk), wk_ref[...],
                 preferred_element_type=jnp.float32).reshape(tb, 1, K, H)

    # Additive-attention features: broadcast add (VPU) + tanh (EUP).
    features = jnp.tanh(qp + kp)                                  # (tb, Q, K, H)

    # w_v contraction over H: VPU multiply + XLU last-axis reduce.
    wv = wv_ref[...].reshape(1, 1, 1, H)
    scores = jnp.sum(features * wv, axis=-1)                      # (tb, Q, K)

    # Mask invalid key positions with -1e6 (matches sequence_mask value).
    lens = lens_ref[...].reshape(tb, 1, 1)                        # (tb, 1, 1)
    col_ids = lax.broadcasted_iota(jnp.int32, (tb, Q, K), 2)      # (tb, Q, K)
    scores = jnp.where(col_ids < lens, scores, jnp.float32(-1e6))

    # Numerically-stable softmax over the key axis
    # (exact division to match the reference tolerance).
    m = jnp.max(scores, axis=-1, keepdims=True)
    e = jnp.exp(scores - m)
    s = jnp.sum(e, axis=-1, keepdims=True)
    attn = e / s                                                  # (tb, Q, K)

    # Weighted sum of values (batched MXU matmul).
    out_ref[...] = jnp.einsum("bqk,bkv->bqv", attn, v_ref[...],
                              preferred_element_type=jnp.float32
                              ).astype(out_ref.dtype)


def additive_attention(queries, keys, values, valid_lens, W_q, W_k, w_v,
                       *, block_b=8):
    """queries (B,Q,Dq) f32, keys (B,K,Dk) f32, values (B,K,Dv) f32,
       valid_lens (B,) int32 or None, W_q (Dq,H), W_k (Dk,H), w_v (H,).
       Returns (B,Q,Dv) f32."""
    B, Q, Dq = queries.shape
    _, K, Dk = keys.shape
    _, _, Dv = values.shape
    H = W_q.shape[1]

    if valid_lens is None:
        valid_lens = jnp.full((B,), K, dtype=jnp.int32)

    # Fold up to block_b batches per grid step (whole batch when B is small).
    tb = min(block_b, B)
    n_steps = pl.cdiv(B, tb)
    Bp = n_steps * tb
    if Bp != B:
        pad = Bp - B
        queries = jnp.pad(queries, ((0, pad), (0, 0), (0, 0)))
        keys = jnp.pad(keys, ((0, pad), (0, 0), (0, 0)))
        values = jnp.pad(values, ((0, pad), (0, 0), (0, 0)))
        valid_lens = jnp.pad(valid_lens, ((0, pad),), constant_values=1)

    lens2d = valid_lens.astype(jnp.int32).reshape(Bp, 1)
    wv_row = w_v.reshape(1, H).astype(jnp.float32)

    # Advisory cost estimate for the XLA scheduler.
    flops = (2 * Bp * Q * Dq * H          # W_q projection
             + 2 * Bp * K * Dk * H        # W_k projection
             + Bp * Q * K * H             # broadcast add
             + 2 * Bp * Q * K * H         # w_v contraction
             + 6 * Bp * Q * K             # mask + softmax
             + 2 * Bp * Q * K * Dv)       # attn @ values
    transcendentals = Bp * Q * K * H + Bp * Q * K    # tanh + exp
    bytes_accessed = 4 * (queries.size + keys.size + values.size
                          + lens2d.size + W_q.size + W_k.size + wv_row.size
                          + Bp * Q * Dv)

    grid_spec = pltpu.PrefetchScalarGridSpec(
        num_scalar_prefetch=0,
        grid=(n_steps,),
        in_specs=[
            pl.BlockSpec((tb, Q, Dq), lambda i: (i, 0, 0)),
            pl.BlockSpec((tb, K, Dk), lambda i: (i, 0, 0)),
            pl.BlockSpec((tb, K, Dv), lambda i: (i, 0, 0)),
            pl.BlockSpec((tb, 1), lambda i: (i, 0)),
            pl.BlockSpec((Dq, H), lambda i: (0, 0)),   # resident across steps
            pl.BlockSpec((Dk, H), lambda i: (0, 0)),   # resident across steps
            pl.BlockSpec((1, H), lambda i: (0, 0)),    # resident across steps
        ],
        out_specs=pl.BlockSpec((tb, Q, Dv), lambda i: (i, 0, 0)),
    )

    out = pl.pallas_call(
        _additive_attn_kernel,
        out_shape=jax.ShapeDtypeStruct((Bp, Q, Dv), jnp.float32),
        grid_spec=grid_spec,
        compiler_params=pltpu.CompilerParams(
            dimension_semantics=("parallel",)),
        cost_estimate=pl.CostEstimate(
            flops=flops,
            transcendentals=transcendentals,
            bytes_accessed=bytes_accessed),
    )(queries, keys, values, lens2d,
      W_q.astype(jnp.float32), W_k.astype(jnp.float32), wv_row)

    return out[:B]


def _reference(queries, keys, values, valid_lens, W_q, W_k, w_v):
    qp = jnp.einsum("bqd,dh->bqh", queries, W_q)
    kp = jnp.einsum("bkd,dh->bkh", keys, W_k)
    feats = jnp.tanh(qp[:, :, None, :] + kp[:, None, :, :])
    scores = jnp.einsum("bqkh,h->bqk", feats, w_v)
    K = scores.shape[-1]
    mask = jnp.arange(K)[None, None, :] < valid_lens[:, None, None]
    scores = jnp.where(mask, scores, -1e6)
    attn = jax.nn.softmax(scores, axis=-1)
    return jnp.einsum("bqk,bkv->bqv", attn, values)


if __name__ == "__main__":
    # Small shapes consistent with the module's forward.
    B, Q, K = 2, 8, 10
    query_size, key_size, num_hiddens, value_dim = 20, 2, 8, 4

    key0 = jax.random.PRNGKey(0)
    k1, k2, k3, k4, k5, k6 = jax.random.split(key0, 6)

    queries = jax.random.normal(k1, (B, Q, query_size), dtype=jnp.float32)
    keys = jax.random.normal(k2, (B, K, key_size), dtype=jnp.float32)
    values = jax.random.normal(k3, (B, K, value_dim), dtype=jnp.float32)
    valid_lens = jnp.array([2, 6], dtype=jnp.int32)

    # Deterministic param init (nn.Linear-style uniform bounds, bias=False).
    def linear_init(k, fan_in, fan_out):
        bound = 1.0 / jnp.sqrt(jnp.float32(fan_in))
        return jax.random.uniform(k, (fan_in, fan_out), jnp.float32, -bound, bound)

    W_q = linear_init(k4, query_size, num_hiddens)   # (Dq, H)
    W_k = linear_init(k5, key_size, num_hiddens)     # (Dk, H)
    w_v = linear_init(k6, num_hiddens, 1)[:, 0]      # (H,)

    out = additive_attention(queries, keys, values, valid_lens, W_q, W_k, w_v)
    out = jax.block_until_ready(out)

    ref = _reference(queries, keys, values, valid_lens, W_q, W_k, w_v)
    assert out.shape == (B, Q, value_dim)
    assert jnp.allclose(out, ref, atol=1e-5, rtol=1e-5), (out, ref)

    print("KERNEL_OK")
</pallas_src>

<mosaic_0001>
module attributes {stable_mosaic.version = 11 : i64} {
  func.func @_additive_attn_kernel(%arg0: i32, %arg1: memref<2x8x20xf32, #tpu.memory_space<vmem>>, %arg2: memref<2x10x2xf32, #tpu.memory_space<vmem>>, %arg3: memref<2x10x4xf32, #tpu.memory_space<vmem>>, %arg4: memref<2x1xi32, #tpu.memory_space<vmem>>, %arg5: memref<20x8xf32, #tpu.memory_space<vmem>>, %arg6: memref<2x8xf32, #tpu.memory_space<vmem>>, %arg7: memref<1x8xf32, #tpu.memory_space<vmem>>, %arg8: memref<2x8x4xf32, #tpu.memory_space<vmem>>) attributes {dimension_semantics = [#tpu.dimension_semantics<parallel>], iteration_bounds = array<i64: 1>, scalar_prefetch = 0 : i64, scratch_operands = 0 : i64, tpu.core_type = #tpu.core_type<tc>, window_params = [{transform_indices = @transform_0, window_bounds = array<i64: 2, 8, 20>}, {transform_indices = @transform_1, window_bounds = array<i64: 2, 10, 2>}, {transform_indices = @transform_2, window_bounds = array<i64: 2, 10, 4>}, {transform_indices = @transform_3, window_bounds = array<i64: 2, 1>}, {pipeline_mode = #tpu.pipeline_mode<synchronous>, transform_indices = @transform_4, window_bounds = array<i64: 20, 8>}, {pipeline_mode = #tpu.pipeline_mode<synchronous>, transform_indices = @transform_5, window_bounds = array<i64: 2, 8>}, {pipeline_mode = #tpu.pipeline_mode<synchronous>, transform_indices = @transform_6, window_bounds = array<i64: 1, 8>}, {transform_indices = @transform_7, window_bounds = array<i64: 2, 8, 4>}]} {
    %c0 = arith.constant 0 : index
    %c0_0 = arith.constant 0 : index
    %c0_1 = arith.constant 0 : index
    %0 = vector.load %arg1[%c0, %c0_0, %c0_1] : memref<2x8x20xf32, #tpu.memory_space<vmem>>, vector<2x8x20xf32>
    %1 = vector.shape_cast %0 : vector<2x8x20xf32> to vector<16x20xf32>
    %c0_2 = arith.constant 0 : index
    %c0_3 = arith.constant 0 : index
    %2 = vector.load %arg5[%c0_2, %c0_3] : memref<20x8xf32, #tpu.memory_space<vmem>>, vector<20x8xf32>
    %cst = arith.constant dense<0.000000e+00> : vector<16x8xf32>
    %3 = tpu.matmul %1, %2, %cst {dimension_numbers = #tpu.dot_dimension_numbers<[1], [0], [0], [1], [0, 0, 1, 1], [], []>} : vector<16x20xf32>, vector<20x8xf32>, vector<16x8xf32> -> vector<16x8xf32>
    %4 = vector.shape_cast %3 : vector<16x8xf32> to vector<2x8x1x8xf32>
    %c0_4 = arith.constant 0 : index
    %c0_5 = arith.constant 0 : index
    %c0_6 = arith.constant 0 : index
    %5 = vector.load %arg2[%c0_4, %c0_5, %c0_6] : memref<2x10x2xf32, #tpu.memory_space<vmem>>, vector<2x10x2xf32>
    %6 = vector.shape_cast %5 : vector<2x10x2xf32> to vector<20x2xf32>
    %c0_7 = arith.constant 0 : index
    %c0_8 = arith.constant 0 : index
    %7 = vector.load %arg6[%c0_7, %c0_8] : memref<2x8xf32, #tpu.memory_space<vmem>>, vector<2x8xf32>
    %cst_9 = arith.constant dense<0.000000e+00> : vector<20x8xf32>
    %8 = tpu.matmul %6, %7, %cst_9 {dimension_numbers = #tpu.dot_dimension_numbers<[1], [0], [0], [1], [0, 0, 1, 1], [], []>} : vector<20x2xf32>, vector<2x8xf32>, vector<20x8xf32> -> vector<20x8xf32>
    %9 = vector.shape_cast %8 : vector<20x8xf32> to vector<2x1x10x8xf32>
    %10 = vector.broadcast %4 : vector<2x8x1x8xf32> to vector<2x8x10x8xf32>
    %11 = vector.broadcast %9 : vector<2x1x10x8xf32> to vector<2x8x10x8xf32>
    %12 = arith.addf %10, %11 : vector<2x8x10x8xf32>
    %13 = math.tanh %12 : vector<2x8x10x8xf32>
    %c0_10 = arith.constant 0 : index
    %c0_11 = arith.constant 0 : index
    %14 = vector.load %arg7[%c0_10, %c0_11] : memref<1x8xf32, #tpu.memory_space<vmem>>, vector<1x8xf32>
    %15 = vector.shape_cast %14 : vector<1x8xf32> to vector<1x1x1x8xf32>
    %16 = vector.broadcast %15 : vector<1x1x1x8xf32> to vector<2x8x10x8xf32>
    %17 = arith.mulf %13, %16 : vector<2x8x10x8xf32>
    %cst_12 = arith.constant dense<0.000000e+00> : vector<2x8x10xf32>
    %18 = vector.multi_reduction <add>, %17, %cst_12 [3] : vector<2x8x10x8xf32> to vector<2x8x10xf32>
    %c0_13 = arith.constant 0 : index
    %c0_14 = arith.constant 0 : index
    %19 = vector.load %arg4[%c0_13, %c0_14] : memref<2x1xi32, #tpu.memory_space<vmem>>, vector<2x1xi32>
    %20 = vector.shape_cast %19 : vector<2x1xi32> to vector<2x1x1xi32>
    %21 = tpu.iota {dimensions = array<i32: 2>} : vector<2x8x10xi32>
    %22 = vector.broadcast %20 : vector<2x1x1xi32> to vector<2x8x10xi32>
    %23 = arith.cmpi slt, %21, %22 : vector<2x8x10xi32>
    %cst_15 = arith.constant -1.000000e+06 : f32
    %24 = vector.broadcast %cst_15 : f32 to vector<2x8x10xf32>
    %25 = arith.select %23, %18, %24 : vector<2x8x10xi1>, vector<2x8x10xf32>
    %cst_16 = arith.constant dense<0xFF800000> : vector<2x8xf32>
    %26 = vector.multi_reduction <maximumf>, %25, %cst_16 [2] : vector<2x8x10xf32> to vector<2x8xf32>
    %27 = vector.shape_cast %26 : vector<2x8xf32> to vector<2x8x1xf32>
    %28 = vector.broadcast %27 : vector<2x8x1xf32> to vector<2x8x10xf32>
    %29 = arith.subf %25, %28 : vector<2x8x10xf32>
    %30 = math.exp %29 : vector<2x8x10xf32>
    %cst_17 = arith.constant dense<0.000000e+00> : vector<2x8xf32>
    %31 = vector.multi_reduction <add>, %30, %cst_17 [2] : vector<2x8x10xf32> to vector<2x8xf32>
    %32 = vector.shape_cast %31 : vector<2x8xf32> to vector<2x8x1xf32>
    %33 = vector.broadcast %32 : vector<2x8x1xf32> to vector<2x8x10xf32>
    %34 = arith.divf %30, %33 : vector<2x8x10xf32>
    %c0_18 = arith.constant 0 : index
    %c0_19 = arith.constant 0 : index
    %c0_20 = arith.constant 0 : index
    %35 = vector.load %arg3[%c0_18, %c0_19, %c0_20] : memref<2x10x4xf32, #tpu.memory_space<vmem>>, vector<2x10x4xf32>
    "tpu.trace_start"() <{level = 10 : i32, message = "bqk,bkv->bqv"}> : () -> ()
    %cst_21 = arith.constant dense<0.000000e+00> : vector<2x8x4xf32>
    %36 = tpu.matmul %34, %35, %cst_21 {dimension_numbers = #tpu.dot_dimension_numbers<[2], [1], [1], [2], [0, 0, 0, 1, 1, 2], [0], [0]>} : vector<2x8x10xf32>, vector<2x10x4xf32>, vector<2x8x4xf32> -> vector<2x8x4xf32>
    "tpu.trace_stop"() : () -> ()
    %c0_22 = arith.constant 0 : index
    %c0_23 = arith.constant 0 : index
    %c0_24 = arith.constant 0 : index
    %37 = vector.load %arg8[%c0_22, %c0_23, %c0_24] : memref<2x8x4xf32, #tpu.memory_space<vmem>>, vector<2x8x4xf32>
    tpu.vector_store %arg8[%c0_22, %c0_23, %c0_24], %36 {strides = array<i32>} : memref<2x8x4xf32, #tpu.memory_space<vmem>>, vector<2x8x4xf32>,
    return
  }
  func.func @transform_0(%arg0: i32) -> (i32, i32, i32) {
    %c0_i32 = arith.constant 0 : i32
    %c0_i32_0 = arith.constant 0 : i32
    %c0_i32_1 = arith.constant 0 : i32
    return %arg0, %c0_i32, %c0_i32_0 : i32, i32, i32
  }
  func.func @transform_1(%arg0: i32) -> (i32, i32, i32) {
    %c0_i32 = arith.constant 0 : i32
    %c0_i32_0 = arith.constant 0 : i32
    %c0_i32_1 = arith.constant 0 : i32
    return %arg0, %c0_i32, %c0_i32_0 : i32, i32, i32
  }
  func.func @transform_2(%arg0: i32) -> (i32, i32, i32) {
    %c0_i32 = arith.constant 0 : i32
    %c0_i32_0 = arith.constant 0 : i32
    %c0_i32_1 = arith.constant 0 : i32
    return %arg0, %c0_i32, %c0_i32_0 : i32, i32, i32
  }
  func.func @transform_3(%arg0: i32) -> (i32, i32) {
    %c0_i32 = arith.constant 0 : i32
    %c0_i32_0 = arith.constant 0 : i32
    return %arg0, %c0_i32 : i32, i32
  }
  func.func @transform_4(%arg0: i32) -> (i32, i32) {
    %c0_i32 = arith.constant 0 : i32
    %c0_i32_0 = arith.constant 0 : i32
    %c0_i32_1 = arith.constant 0 : i32
    return %c0_i32, %c0_i32_0 : i32, i32
  }
  func.func @transform_5(%arg0: i32) -> (i32, i32) {
    %c0_i32 = arith.constant 0 : i32
    %c0_i32_0 = arith.constant 0 : i32
    %c0_i32_1 = arith.constant 0 : i32
    return %c0_i32, %c0_i32_0 : i32, i32
  }
  func.func @transform_6(%arg0: i32) -> (i32, i32) {
    %c0_i32 = arith.constant 0 : i32
    %c0_i32_0 = arith.constant 0 : i32
    %c0_i32_1 = arith.constant 0 : i32
    return %c0_i32, %c0_i32_0 : i32, i32
  }
  func.func @transform_7(%arg0: i32) -> (i32, i32, i32) {
    %c0_i32 = arith.constant 0 : i32
    %c0_i32_0 = arith.constant 0 : i32
    %c0_i32_1 = arith.constant 0 : i32
    return %arg0, %c0_i32, %c0_i32_0 : i32, i32, i32
  }
}

</mosaic_0001>

<llo_original>
// kernel: tpu_custom_call.1
$region0: #{tpu_custom_call.1}
  #allocation0 [shape = 'u32[]', space=smem, size = 0x4, offset = 0x4, fixed_abs, tag = 'smem constant byte address 0x4 - core index']
  #allocation1 [shape = 'u32[72,128]{1,0:T(1,128)}', space=vmem, size = 0x9000, scoped, tag = 'internal scratch']
  %s0 = inlined_call_operand.vmem [shape: f32[2,8,20], index: 0, kind: input, shape index: {}]
  %s1 = inlined_call_operand.vmem [shape: f32[2,10,2], index: 1, kind: input, shape index: {}]
  %s2 = inlined_call_operand.vmem [shape: f32[2,10,4], index: 2, kind: input, shape index: {}]
  %s3 = inlined_call_operand.vmem [shape: s32[2,1], index: 3, kind: input, shape index: {}]
  %s4 = inlined_call_operand.vmem [shape: f32[20,8], index: 4, kind: input, shape index: {}]
  %s5 = inlined_call_operand.vmem [shape: f32[2,8], index: 5, kind: input, shape index: {}]
  %s6 = inlined_call_operand.vmem [shape: f32[1,8], index: 6, kind: input, shape index: {}]
  %s7 = inlined_call_operand.vmem [shape: f32[2,8,4], index: 7, kind: output, shape index: {}]
  %s8 = sld [smem:[#allocation0]]
  $region38: #{tpu_custom_call.1} parent=0
    _
  %s10 = ssub.s32 1, %s8
  %s11 = scalar_select 0, %s10, %s8
  // Predicated region
  $region2: #{tpu_custom_call.1} parent=0 // pred_check
    _
  $region3: #{tpu_custom_call.1} parent=0 // pred_check_branch
    %13 = sbr.rel (0) target = $region5
  $region4: #{tpu_custom_call.1} parent=0 // pred_region
    _
  $region5: #{tpu_custom_call.1} parent=0 // pred_fallthru
    _
  // Predicated region
  $region6: #{tpu_custom_call.1} parent=0 // pred_check
    _
  $region7: #{tpu_custom_call.1} parent=0 // pred_check_branch
    %15 = sbr.rel (0) target = $region9
  $region8: #{tpu_custom_call.1} parent=0 // pred_region
    _
  $region9: #{tpu_custom_call.1} parent=0 // pred_fallthru
    _
  // Predicated region
  $region10: #{tpu_custom_call.1} parent=0 // pred_check
    _
  $region11: #{tpu_custom_call.1} parent=0 // pred_check_branch
    %17 = sbr.rel (0) target = $region13
  $region12: #{tpu_custom_call.1} parent=0 // pred_region
    _
  $region13: #{tpu_custom_call.1} parent=0 // pred_fallthru
    _
  // Predicated region
  $region14: #{tpu_custom_call.1} parent=0 // pred_check
    _
  $region15: #{tpu_custom_call.1} parent=0 // pred_check_branch
    %19 = sbr.rel (0) target = $region17
  $region16: #{tpu_custom_call.1} parent=0 // pred_region
    _
  $region17: #{tpu_custom_call.1} parent=0 // pred_fallthru
    _
  // Predicated region
  $region18: #{tpu_custom_call.1} parent=0 // pred_check
    _
  $region19: #{tpu_custom_call.1} parent=0 // pred_check_branch
    %21 = sbr.rel (0) target = $region21
  $region20: #{tpu_custom_call.1} parent=0 // pred_region
    _
  $region21: #{tpu_custom_call.1} parent=0 // pred_fallthru
    _
  // Predicated region
  $region22: #{tpu_custom_call.1} parent=0 // pred_check
    _
  $region23: #{tpu_custom_call.1} parent=0 // pred_check_branch
    %23 = sbr.rel (0) target = $region25
  $region24: #{tpu_custom_call.1} parent=0 // pred_region
    _
  $region25: #{tpu_custom_call.1} parent=0 // pred_fallthru
    _
  // Predicated region
  $region26: #{tpu_custom_call.1} parent=0 // pred_check
    _
  $region27: #{tpu_custom_call.1} parent=0 // pred_check_branch
    %25 = sbr.rel (0) target = $region29
  $region28: #{tpu_custom_call.1} parent=0 // pred_region
    _
  $region29: #{tpu_custom_call.1} parent=0 // pred_fallthru
    _
  %v26 = vld [vmem:[%s0] sm:$0xff]
  %v27 = vld [vmem:[%s0 + $0x8] sm:$0xff]
  %v28 = vld [vmem:[%s4] sm:$0xff]
  %v29 = vld [vmem:[%s4 + $0x8] sm:$0xff]
  %v30 = vld [vmem:[%s4 + $0x10] sm:$0xf]
  %vm31 = vcmask 162816
  %v33 = vsel %vm31, %v26, 0
  %v36 = vsel %vm31, %v27, 0
  %vm38 = vcmask 1043456
  %v40 = vsel %vm38, %v30, 0
  %42 = vmatpush.msra.mxu0 0.0
  %43 = vmatpush.msra.mxu0 0.0
  %44 = vmatpush.msra.mxu0 0.0
  %45 = vmatpush.msra.mxu0 0.0
  %46 = vmatpush.msra.mxu0 0.0
  %47 = vmatpush.msra.mxu0 0.0
  %48 = vmatpush.msra.mxu0 0.0
  %49 = vmatpush.msra.mxu0 0.0
  %50 = vmatpush.msra.mxu0 0.0
  %51 = vmatpush.msra.mxu0 0.0
  %52 = vmatpush.msra.mxu0 0.0
  %53 = vmatpush.msra.mxu0 0.0
  %54 = vmatpush.msra.mxu0 0.0
  %55 = vmatpush.msra.mxu0 %v40
  %56 = vmatpush.msra.mxu0 %v29
  %57 = vmatpush.msra.mxu0 %v28
  %58 = vmatmul.f32.gmra.mxu0 %v33
  %v59 = vpop.f32.mrf.mxu0
  %v60 = vadd.f32 0.0, %v59
  %61 = vmatmul.f32.gmra.mxu0 %v36
  %v62 = vpop.f32.mrf.mxu0
  %v63 = vadd.f32 0.0, %v62
  %64 = vdwg.mxu0
  %v67 = vrot.slane %v60, 1
  %v68 = vrot.slane %v60, 2
  %v69 = vrot.slane %v60, 3
  %v70 = vrot.slane %v60, 4
  %v71 = vrot.slane %v60, 5
  %v72 = vrot.slane %v60, 6
  %v73 = vrot.slane %v60, 7
  %v74 = vrot.slane %v63, 1
  %v75 = vrot.slane %v63, 2
  %v76 = vrot.slane %v63, 3
  %v77 = vrot.slane %v63, 4
  %v78 = vrot.slane %v63, 5
  %v79 = vrot.slane %v63, 6
  %v80 = vrot.slane %v63, 7
  %v81 = vld [vmem:[%s1] sm:$0xff]
  %v82 = vld [vmem:[%s1 + $0x8] sm:$0x3]
  %v83 = vld [vmem:[%s1 + $0x10] sm:$0xff]
  %v84 = vld [vmem:[%s1 + $0x18] sm:$0x3]
  %v89 = vrot.slane %v81, 2
  %v90 = vrot.slane %v81, 4
  %v91 = vrot.slane %v81, 6
  %v92 = vrot.slane %v83, 2
  %v93 = vrot.slane %v83, 4
  %v94 = vrot.slane %v83, 6
  %v95 = vld [vmem:[%s5] sm:$0x3]
  %96 = vst [vmem:[#allocation1] ss:$4 sm:$0xff] %v81
  %s97 = scalar_lea.vmem [#allocation1], 1
  %98 = vst [vmem:[%s97] ss:$4 sm:$0xff] %v89
  %s99 = scalar_lea.vmem [#allocation1], 2
  %100 = vst [vmem:[%s99] ss:$4 sm:$0xff] %v90
  %s101 = scalar_lea.vmem [#allocation1], 3
  %102 = vst [vmem:[%s101] ss:$4 sm:$0xff] %v91
  %s103 = scalar_lea.vmem [#allocation1], 32
  %104 = vst [vmem:[%s103] ss:$4 sm:$0xff] %v82
  %s105 = scalar_lea.vmem [#allocation1], 33
  %106 = vst [vmem:[%s105] ss:$4 sm:$0xff] %v83
  %s107 = scalar_lea.vmem [#allocation1], 34
  %108 = vst [vmem:[%s107] ss:$4 sm:$0xff] %v92
  %s109 = scalar_lea.vmem [#allocation1], 35
  %110 = vst [vmem:[%s109] ss:$4 sm:$0xff] %v93
  %v111 = vld.sshfl [vmem:[#allocation1] sm:$0xff pattern:$0x73625140]
  %v112 = vld.sshfl [vmem:[#allocation1 + $0x20] sm:$0xff pattern:$0x73625140]
  %113 = vst [vmem:[#allocation1] ss:$4 sm:$0xff] %v94
  %114 = vst [vmem:[%s97] ss:$4 sm:$0xff] %v84
  %v115 = vld.sshfl [vmem:[#allocation1] sm:$0xff pattern:$0x73625140]
  %vm116 = vcmask 15360
  %v117 = vsel %vm116, %v111, 0
  %v119 = vsel %vm116, %v112, 0
  %v121 = vsel %vm116, %v115, 0
  %vm123 = vcmask 1041408
  %v125 = vsel %vm123, %v95, 0
  %127 = vmatpush.msra.mxu0 0.0
  %128 = vmatpush.msra.mxu0 0.0
  %129 = vmatpush.msra.mxu0 0.0
  %130 = vmatpush.msra.mxu0 0.0
  %131 = vmatpush.msra.mxu0 0.0
  %132 = vmatpush.msra.mxu0 0.0
  %133 = vmatpush.msra.mxu0 0.0
  %134 = vmatpush.msra.mxu0 0.0
  %135 = vmatpush.msra.mxu0 0.0
  %136 = vmatpush.msra.mxu0 0.0
  %137 = vmatpush.msra.mxu0 0.0
  %138 = vmatpush.msra.mxu0 0.0
  %139 = vmatpush.msra.mxu0 0.0
  %140 = vmatpush.msra.mxu0 0.0
  %141 = vmatpush.msra.mxu0 0.0
  %142 = vmatpush.msra.mxu0 %v125
  %143 = vmatmul.f32.gmra.mxu0 %v117
  %v144 = vpop.f32.mrf.mxu0
  %v145 = vadd.f32 0.0, %v144
  %146 = vmatmul.f32.gmra.mxu0 %v119
  %v147 = vpop.f32.mrf.mxu0
  %v148 = vadd.f32 0.0, %v147
  %149 = vmatmul.f32.gmra.mxu0 %v121
  %v150 = vpop.f32.mrf.mxu0
  %v151 = vadd.f32 0.0, %v150
  %152 = vdwg.mxu0
  %v156 = vrot.slane %v145, 2
  %v157 = vrot.slane %v145, 4
  %v158 = vrot.slane %v145, 6
  %v159 = vrot.slane %v148, 2
  %v160 = vrot.slane %v148, 4
  %v161 = vrot.slane %v148, 6
  %v162 = vrot.slane %v151, 2
  %v163 = vperm.slane %v60, 0
  %v164 = vperm.slane %v67, 0
  %v165 = vperm.slane %v68, 0
  %v166 = vperm.slane %v69, 0
  %v167 = vperm.slane %v70, 0
  %v168 = vperm.slane %v71, 0
  %v169 = vperm.slane %v72, 0
  %v170 = vperm.slane %v73, 0
  %v171 = vperm.slane %v63, 0
  %v172 = vperm.slane %v74, 0
  %v173 = vperm.slane %v75, 0
  %v174 = vperm.slane %v76, 0
  %v175 = vperm.slane %v77, 0
  %v176 = vperm.slane %v78, 0
  %v177 = vperm.slane %v79, 0
  %v178 = vperm.slane %v80, 0
  %195 = vst [vmem:[#allocation1] ss:$4 sm:$0xff] %v145
  %s196 = scalar_lea.vmem [#allocation1], 1
  %197 = vst [vmem:[%s196] ss:$4 sm:$0xff] %v156
  %s198 = scalar_lea.vmem [#allocation1], 2
  %199 = vst [vmem:[%s198] ss:$4 sm:$0xff] %v157
  %s200 = scalar_lea.vmem [#allocation1], 3
  %201 = vst [vmem:[%s200] ss:$4 sm:$0xff] %v158
  %s202 = scalar_lea.vmem [#allocation1], 32
  %203 = vst [vmem:[%s202] ss:$4 sm:$0xff] %v148
  %v204 = vld.sshfl [vmem:[#allocation1] sm:$0xff pattern:$0x73625140]
  %v205 = vld.sshfl [vmem:[#allocation1 + $0x20] sm:$0xff pattern:$0x73625140]
  %206 = vst [vmem:[#allocation1] ss:$4 sm:$0xff] %v145
  %207 = vst [vmem:[%s196] ss:$4 sm:$0xff] %v156
  %208 = vst [vmem:[%s198] ss:$4 sm:$0xff] %v157
  %209 = vst [vmem:[%s200] ss:$4 sm:$0xff] %v158
  %210 = vst [vmem:[%s202] ss:$4 sm:$0xff] %v148
  %v211 = vld.sshfl [vmem:[#allocation1] sm:$0xff pattern:$0x73625140]
  %v212 = vld.sshfl [vmem:[#allocation1 + $0x20] sm:$0xff pattern:$0x73625140]
  %213 = vst [vmem:[#allocation1] ss:$4 sm:$0xff] %v145
  %214 = vst [vmem:[%s196] ss:$4 sm:$0xff] %v156
  %215 = vst [vmem:[%s198] ss:$4 sm:$0xff] %v157
  %216 = vst [vmem:[%s200] ss:$4 sm:$0xff] %v158
  %217 = vst [vmem:[%s202] ss:$4 sm:$0xff] %v148
  %v218 = vld.sshfl [vmem:[#allocation1] sm:$0xff pattern:$0x73625140]
  %v219 = vld.sshfl [vmem:[#allocation1 + $0x20] sm:$0xff pattern:$0x73625140]
  %220 = vst [vmem:[#allocation1] ss:$4 sm:$0xff] %v145
  %221 = vst [vmem:[%s196] ss:$4 sm:$0xff] %v156
  %222 = vst [vmem:[%s198] ss:$4 sm:$0xff] %v157
  %223 = vst [vmem:[%s200] ss:$4 sm:$0xff] %v158
  %224 = vst [vmem:[%s202] ss:$4 sm:$0xff] %v148
  %v225 = vld.sshfl [vmem:[#allocation1] sm:$0xff pattern:$0x73625140]
  %v226 = vld.sshfl [vmem:[#allocation1 + $0x20] sm:$0xff pattern:$0x73625140]
  %227 = vst [vmem:[#allocation1] ss:$4 sm:$0xff] %v145
  %228 = vst [vmem:[%s196] ss:$4 sm:$0xff] %v156
  %229 = vst [vmem:[%s198] ss:$4 sm:$0xff] %v157
  %230 = vst [vmem:[%s200] ss:$4 sm:$0xff] %v158
  %231 = vst [vmem:[%s202] ss:$4 sm:$0xff] %v148
  %v232 = vld.sshfl [vmem:[#allocation1] sm:$0xff pattern:$0x73625140]
  %v233 = vld.sshfl [vmem:[#allocation1 + $0x20] sm:$0xff pattern:$0x73625140]
  %234 = vst [vmem:[#allocation1] ss:$4 sm:$0xff] %v145
  %235 = vst [vmem:[%s196] ss:$4 sm:$0xff] %v156
  %236 = vst [vmem:[%s198] ss:$4 sm:$0xff] %v157
  %237 = vst [vmem:[%s200] ss:$4 sm:$0xff] %v158
  %238 = vst [vmem:[%s202] ss:$4 sm:$0xff] %v148
  %v239 = vld.sshfl [vmem:[#allocation1] sm:$0xff pattern:$0x73625140]
  %v240 = vld.sshfl [vmem:[#allocation1 + $0x20] sm:$0xff pattern:$0x73625140]
  %241 = vst [vmem:[#allocation1] ss:$4 sm:$0xff] %v145
  %242 = vst [vmem:[%s196] ss:$4 sm:$0xff] %v156
  %243 = vst [vmem:[%s198] ss:$4 sm:$0xff] %v157
  %244 = vst [vmem:[%s200] ss:$4 sm:$0xff] %v158
  %245 = vst [vmem:[%s202] ss:$4 sm:$0xff] %v148
  %v246 = vld.sshfl [vmem:[#allocation1] sm:$0xff pattern:$0x73625140]
  %v247 = vld.sshfl [vmem:[#allocation1 + $0x20] sm:$0xff pattern:$0x73625140]
  %248 = vst [vmem:[#allocation1] ss:$4 sm:$0xff] %v145
  %249 = vst [vmem:[%s196] ss:$4 sm:$0xff] %v156
  %250 = vst [vmem:[%s198] ss:$4 sm:$0xff] %v157
  %251 = vst [vmem:[%s200] ss:$4 sm:$0xff] %v158
  %252 = vst [vmem:[%s202] ss:$4 sm:$0xff] %v148
  %v253 = vld.sshfl [vmem:[#allocation1] sm:$0xff pattern:$0x73625140]
  %v254 = vld.sshfl [vmem:[#allocation1 + $0x20] sm:$0xff pattern:$0x73625140]
  %255 = vst [vmem:[#allocation1] ss:$4 sm:$0xff] %v159
  %256 = vst [vmem:[%s196] ss:$4 sm:$0xff] %v160
  %257 = vst [vmem:[%s198] ss:$4 sm:$0xff] %v161
  %258 = vst [vmem:[%s200] ss:$4 sm:$0xff] %v151
  %259 = vst [vmem:[%s202] ss:$4 sm:$0xff] %v162
  %v260 = vld.sshfl [vmem:[#allocation1] sm:$0xff pattern:$0x73625140]
  %v261 = vld.sshfl [vmem:[#allocation1 + $0x20] sm:$0xff pattern:$0x73625140]
  %262 = vst [vmem:[#allocation1] ss:$4 sm:$0xff] %v159
  %263 = vst [vmem:[%s196] ss:$4 sm:$0xff] %v160
  %264 = vst [vmem:[%s198] ss:$4 sm:$0xff] %v161
  %265 = vst [vmem:[%s200] ss:$4 sm:$0xff] %v151
  %266 = vst [vmem:[%s202] ss:$4 sm:$0xff] %v162
  %v267 = vld.sshfl [vmem:[#allocation1] sm:$0xff pattern:$0x73625140]
  %v268 = vld.sshfl [vmem:[#allocation1 + $0x20] sm:$0xff pattern:$0x73625140]
  %269 = vst [vmem:[#allocation1] ss:$4 sm:$0xff] %v159
  %270 = vst [vmem:[%s196] ss:$4 sm:$0xff] %v160
  %271 = vst [vmem:[%s198] ss:$4 sm:$0xff] %v161
  %272 = vst [vmem:[%s200] ss:$4 sm:$0xff] %v151
  %273 = vst [vmem:[%s202] ss:$4 sm:$0xff] %v162
  %v274 = vld.sshfl [vmem:[#allocation1] sm:$0xff pattern:$0x73625140]
  %v275 = vld.sshfl [vmem:[#allocation1 + $0x20] sm:$0xff pattern:$0x73625140]
  %276 = vst [vmem:[#allocation1] ss:$4 sm:$0xff] %v159
  %277 = vst [vmem:[%s196] ss:$4 sm:$0xff] %v160
  %278 = vst [vmem:[%s198] ss:$4 sm:$0xff] %v161
  %279 = vst [vmem:[%s200] ss:$4 sm:$0xff] %v151
  %280 = vst [vmem:[%s202] ss:$4 sm:$0xff] %v162
  %v281 = vld.sshfl [vmem:[#allocation1] sm:$0xff pattern:$0x73625140]
  %v282 = vld.sshfl [vmem:[#allocation1 + $0x20] sm:$0xff pattern:$0x73625140]
  %283 = vst [vmem:[#allocation1] ss:$4 sm:$0xff] %v159
  %284 = vst [vmem:[%s196] ss:$4 sm:$0xff] %v160
  %285 = vst [vmem:[%s198] ss:$4 sm:$0xff] %v161
  %286 = vst [vmem:[%s200] ss:$4 sm:$0xff] %v151
  %287 = vst [vmem:[%s202] ss:$4 sm:$0xff] %v162
  %v288 = vld.sshfl [vmem:[#allocation1] sm:$0xff pattern:$0x73625140]
  %v289 = vld.sshfl [vmem:[#allocation1 + $0x20] sm:$0xff pattern:$0x73625140]
  %290 = vst [vmem:[#allocation1] ss:$4 sm:$0xff] %v159
  %291 = vst [vmem:[%s196] ss:$4 sm:$0xff] %v160
  %292 = vst [vmem:[%s198] ss:$4 sm:$0xff] %v161
  %293 = vst [vmem:[%s200] ss:$4 sm:$0xff] %v151
  %294 = vst [vmem:[%s202] ss:$4 sm:$0xff] %v162
  %v295 = vld.sshfl [vmem:[#allocation1] sm:$0xff pattern:$0x73625140]
  %v296 = vld.sshfl [vmem:[#allocation1 + $0x20] sm:$0xff pattern:$0x73625140]
  %297 = vst [vmem:[#allocation1] ss:$4 sm:$0xff] %v159
  %298 = vst [vmem:[%s196] ss:$4 sm:$0xff] %v160
  %299 = vst [vmem:[%s198] ss:$4 sm:$0xff] %v161
  %300 = vst [vmem:[%s200] ss:$4 sm:$0xff] %v151
  %301 = vst [vmem:[%s202] ss:$4 sm:$0xff] %v162
  %v302 = vld.sshfl [vmem:[#allocation1] sm:$0xff pattern:$0x73625140]
  %v303 = vld.sshfl [vmem:[#allocation1 + $0x20] sm:$0xff pattern:$0x73625140]
  %304 = vst [vmem:[#allocation1] ss:$4 sm:$0xff] %v159
  %305 = vst [vmem:[%s196] ss:$4 sm:$0xff] %v160
  %306 = vst [vmem:[%s198] ss:$4 sm:$0xff] %v161
  %307 = vst [vmem:[%s200] ss:$4 sm:$0xff] %v151
  %308 = vst [vmem:[%s202] ss:$4 sm:$0xff] %v162
  %v309 = vld.sshfl [vmem:[#allocation1] sm:$0xff pattern:$0x73625140]
  %v310 = vld.sshfl [vmem:[#allocation1 + $0x20] sm:$0xff pattern:$0x73625140]
  %v343 = vadd.f32 %v163, %v204
  %v344 = vadd.f32 %v163, %v205
  %v345 = vadd.f32 %v164, %v211
  %v346 = vadd.f32 %v164, %v212
  %v347 = vadd.f32 %v165, %v218
  %v348 = vadd.f32 %v165, %v219
  %v349 = vadd.f32 %v166, %v225
  %v350 = vadd.f32 %v166, %v226
  %v351 = vadd.f32 %v167, %v232
  %v352 = vadd.f32 %v167, %v233
  %v353 = vadd.f32 %v168, %v239
  %v354 = vadd.f32 %v168, %v240
  %v355 = vadd.f32 %v169, %v246
  %v356 = vadd.f32 %v169, %v247
  %v357 = vadd.f32 %v170, %v253
  %v358 = vadd.f32 %v170, %v254
  %v359 = vadd.f32 %v171, %v260
  %v360 = vadd.f32 %v171, %v261
  %v361 = vadd.f32 %v172, %v267
  %v362 = vadd.f32 %v172, %v268
  %v363 = vadd.f32 %v173, %v274
  %v364 = vadd.f32 %v173, %v275
  %v365 = vadd.f32 %v174, %v281
  %v366 = vadd.f32 %v174, %v282
  %v367 = vadd.f32 %v175, %v288
  %v368 = vadd.f32 %v175, %v289
  %v369 = vadd.f32 %v176, %v295
  %v370 = vadd.f32 %v176, %v296
  %v371 = vadd.f32 %v177, %v302
  %v372 = vadd.f32 %v177, %v303
  %v373 = vadd.f32 %v178, %v309
  %v374 = vadd.f32 %v178, %v310
  %v375 = vtanh.pop %v343
  %v376 = vtanh.pop %v344
  %v377 = vtanh.pop %v345
  %v378 = vtanh.pop %v346
  %v379 = vtanh.pop %v347
  %v380 = vtanh.pop %v348
  %v381 = vtanh.pop %v349
  %v382 = vtanh.pop %v350
  %v383 = vtanh.pop %v351
  %v384 = vtanh.pop %v352
  %v385 = vtanh.pop %v353
  %v386 = vtanh.pop %v354
  %v387 = vtanh.pop %v355
  %v388 = vtanh.pop %v356
  %v389 = vtanh.pop %v357
  %v390 = vtanh.pop %v358
  %v391 = vtanh.pop %v359
  %v392 = vtanh.pop %v360
  %v393 = vtanh.pop %v361
  %v394 = vtanh.pop %v362
  %v395 = vtanh.pop %v363
  %v396 = vtanh.pop %v364
  %v397 = vtanh.pop %v365
  %v398 = vtanh.pop %v366
  %v399 = vtanh.pop %v367
  %v400 = vtanh.pop %v368
  %v401 = vtanh.pop %v369
  %v402 = vtanh.pop %v370
  %v403 = vtanh.pop %v371
  %v404 = vtanh.pop %v372
  %v405 = vtanh.pop %v373
  %v406 = vtanh.pop %v374
  %v407 = vld [vmem:[%s6] sm:$0x1]
  %v409 = vperm.slane %v407, 0
  %v411 = vmul.f32 %v375, %v409
  %v412 = vmul.f32 %v376, %v409
  %v413 = vmul.f32 %v377, %v409
  %v414 = vmul.f32 %v378, %v409
  %v415 = vmul.f32 %v379, %v409
  %v416 = vmul.f32 %v380, %v409
  %v417 = vmul.f32 %v381, %v409
  %v418 = vmul.f32 %v382, %v409
  %v419 = vmul.f32 %v383, %v409
  %v420 = vmul.f32 %v384, %v409
  %v421 = vmul.f32 %v385, %v409
  %v422 = vmul.f32 %v386, %v409
  %v423 = vmul.f32 %v387, %v409
  %v424 = vmul.f32 %v388, %v409
  %v425 = vmul.f32 %v389, %v409
  %v426 = vmul.f32 %v390, %v409
  %v427 = vmul.f32 %v391, %v409
  %v428 = vmul.f32 %v392, %v409
  %v429 = vmul.f32 %v393, %v409
  %v430 = vmul.f32 %v394, %v409
  %v431 = vmul.f32 %v395, %v409
  %v432 = vmul.f32 %v396, %v409
  %v433 = vmul.f32 %v397, %v409
  %v434 = vmul.f32 %v398, %v409
  %v435 = vmul.f32 %v399, %v409
  %v436 = vmul.f32 %v400, %v409
  %v437 = vmul.f32 %v401, %v409
  %v438 = vmul.f32 %v402, %v409
  %v439 = vmul.f32 %v403, %v409
  %v440 = vmul.f32 %v404, %v409
  %v441 = vmul.f32 %v405, %v409
  %v442 = vmul.f32 %v406, %v409
  %vm443 = vcmask 64512
  %v444 = vsel %vm443, %v411, 0.0
  %445 = vadd.xlane.f32.xlu0 %v444
  %v446 = vpop.xlane.xlu0 %445
  %vm447 = vcmask 58368
  %v448 = vsel %vm447, %v412, 0.0
  %449 = vadd.xlane.f32.xlu0 %v448
  %v450 = vpop.xlane.xlu0 %449
  %v451 = vsel %vm443, %v413, 0.0
  %452 = vadd.xlane.f32.xlu0 %v451
  %v453 = vpop.xlane.xlu0 %452
  %v454 = vsel %vm447, %v414, 0.0
  %455 = vadd.xlane.f32.xlu0 %v454
  %v456 = vpop.xlane.xlu0 %455
  %v457 = vsel %vm443, %v415, 0.0
  %458 = vadd.xlane.f32.xlu0 %v457
  %v459 = vpop.xlane.xlu0 %458
  %v460 = vsel %vm447, %v416, 0.0
  %461 = vadd.xlane.f32.xlu0 %v460
  %v462 = vpop.xlane.xlu0 %461
  %v463 = vsel %vm443, %v417, 0.0
  %464 = vadd.xlane.f32.xlu0 %v463
  %v465 = vpop.xlane.xlu0 %464
  %v466 = vsel %vm447, %v418, 0.0
  %467 = vadd.xlane.f32.xlu0 %v466
  %v468 = vpop.xlane.xlu0 %467
  %v469 = vsel %vm443, %v419, 0.0
  %470 = vadd.xlane.f32.xlu0 %v469
  %v471 = vpop.xlane.xlu0 %470
  %v472 = vsel %vm447, %v420, 0.0
  %473 = vadd.xlane.f32.xlu0 %v472
  %v474 = vpop.xlane.xlu0 %473
  %v475 = vsel %vm443, %v421, 0.0
  %476 = vadd.xlane.f32.xlu0 %v475
  %v477 = vpop.xlane.xlu0 %476
  %v478 = vsel %vm447, %v422, 0.0
  %479 = vadd.xlane.f32.xlu0 %v478
  %v480 = vpop.xlane.xlu0 %479
  %v481 = vsel %vm443, %v423, 0.0
  %482 = vadd.xlane.f32.xlu0 %v481
  %v483 = vpop.xlane.xlu0 %482
  %v484 = vsel %vm447, %v424, 0.0
  %485 = vadd.xlane.f32.xlu0 %v484
  %v486 = vpop.xlane.xlu0 %485
  %v487 = vsel %vm443, %v425, 0.0
  %488 = vadd.xlane.f32.xlu0 %v487
  %v489 = vpop.xlane.xlu0 %488
  %v490 = vsel %vm447, %v426, 0.0
  %491 = vadd.xlane.f32.xlu0 %v490
  %v492 = vpop.xlane.xlu0 %491
  %v493 = vsel %vm443, %v427, 0.0
  %494 = vadd.xlane.f32.xlu0 %v493
  %v495 = vpop.xlane.xlu0 %494
  %v496 = vsel %vm447, %v428, 0.0
  %497 = vadd.xlane.f32.xlu0 %v496
  %v498 = vpop.xlane.xlu0 %497
  %v499 = vsel %vm443, %v429, 0.0
  %500 = vadd.xlane.f32.xlu0 %v499
  %v501 = vpop.xlane.xlu0 %500
  %v502 = vsel %vm447, %v430, 0.0
  %503 = vadd.xlane.f32.xlu0 %v502
  %v504 = vpop.xlane.xlu0 %503
  %v505 = vsel %vm443, %v431, 0.0
  %506 = vadd.xlane.f32.xlu0 %v505
  %v507 = vpop.xlane.xlu0 %506
  %v508 = vsel %vm447, %v432, 0.0
  %509 = vadd.xlane.f32.xlu0 %v508
  %v510 = vpop.xlane.xlu0 %509
  %v511 = vsel %vm443, %v433, 0.0
  %512 = vadd.xlane.f32.xlu0 %v511
  %v513 = vpop.xlane.xlu0 %512
  %v514 = vsel %vm447, %v434, 0.0
  %515 = vadd.xlane.f32.xlu0 %v514
  %v516 = vpop.xlane.xlu0 %515
  %v517 = vsel %vm443, %v435, 0.0
  %518 = vadd.xlane.f32.xlu0 %v517
  %v519 = vpop.xlane.xlu0 %518
  %v520 = vsel %vm447, %v436, 0.0
  %521 = vadd.xlane.f32.xlu0 %v520
  %v522 = vpop.xlane.xlu0 %521
  %v523 = vsel %vm443, %v437, 0.0
  %524 = vadd.xlane.f32.xlu0 %v523
  %v525 = vpop.xlane.xlu0 %524
  %v526 = vsel %vm447, %v438, 0.0
  %527 = vadd.xlane.f32.xlu0 %v526
  %v528 = vpop.xlane.xlu0 %527
  %v529 = vsel %vm443, %v439, 0.0
  %530 = vadd.xlane.f32.xlu0 %v529
  %v531 = vpop.xlane.xlu0 %530
  %v532 = vsel %vm447, %v440, 0.0
  %533 = vadd.xlane.f32.xlu0 %v532
  %v534 = vpop.xlane.xlu0 %533
  %v535 = vsel %vm443, %v441, 0.0
  %536 = vadd.xlane.f32.xlu0 %v535
  %v537 = vpop.xlane.xlu0 %536
  %v538 = vsel %vm447, %v442, 0.0
  %539 = vadd.xlane.f32.xlu0 %v538
  %v540 = vpop.xlane.xlu0 %539
  %v541 = vld [vmem:[%s3] sm:$0x3]
  %v542 = vrot.slane %v541, 1
  %v543 = vlaneseq
  %v544 = vand.u32 %v543, 127
  %v545 = vperm.slane %v541, 0
  %v546 = vperm.slane %v542, 0
  %547 = vset.pattern.permute.xlu0 0
  %548 = vperm.xlu0 %547, %v545
  %v549 = vpop.permute.xlu0 %548
  %550 = vset.pattern.permute.xlu0 0
  %551 = vperm.xlu0 %550, %v546
  %v552 = vpop.permute.xlu0 %551
  %vm553 = vcmp.lt.s32.totalorder %v544, %v549
  %vm554 = vcmp.lt.s32.totalorder %v544, %v552
  %v587 = vperm.slane %v446, %v544
  %v588 = vadd.s32 %v544, 4294967288
  %v589 = vperm.slane %v450, %v588
  %vm590 = vcmask 130112
  %v591 = vsel %vm590, %v589, %v587
  %v592 = vperm.slane %v453, %v544
  %v593 = vperm.slane %v456, %v588
  %v594 = vsel %vm590, %v593, %v592
  %v595 = vperm.slane %v459, %v544
  %v596 = vperm.slane %v462, %v588
  %v597 = vsel %vm590, %v596, %v595
  %v598 = vperm.slane %v465, %v544
  %v599 = vperm.slane %v468, %v588
  %v600 = vsel %vm590, %v599, %v598
  %v601 = vperm.slane %v471, %v544
  %v602 = vperm.slane %v474, %v588
  %v603 = vsel %vm590, %v602, %v601
  %v604 = vperm.slane %v477, %v544
  %v605 = vperm.slane %v480, %v588
  %v606 = vsel %vm590, %v605, %v604
  %v607 = vperm.slane %v483, %v544
  %v608 = vperm.slane %v486, %v588
  %v609 = vsel %vm590, %v608, %v607
  %v610 = vperm.slane %v489, %v544
  %v611 = vperm.slane %v492, %v588
  %v612 = vsel %vm590, %v611, %v610
  %v613 = vperm.slane %v495, %v544
  %v614 = vperm.slane %v498, %v588
  %v615 = vsel %vm590, %v614, %v613
  %v616 = vperm.slane %v501, %v544
  %v617 = vperm.slane %v504, %v588
  %v618 = vsel %vm590, %v617, %v616
  %v619 = vperm.slane %v507, %v544
  %v620 = vperm.slane %v510, %v588
  %v621 = vsel %vm590, %v620, %v619
  %v622 = vperm.slane %v513, %v544
  %v623 = vperm.slane %v516, %v588
  %v624 = vsel %vm590, %v623, %v622
  %v625 = vperm.slane %v519, %v544
  %v626 = vperm.slane %v522, %v588
  %v627 = vsel %vm590, %v626, %v625
  %v628 = vperm.slane %v525, %v544
  %v629 = vperm.slane %v528, %v588
  %v630 = vsel %vm590, %v629, %v628
  %v631 = vperm.slane %v531, %v544
  %v632 = vperm.slane %v534, %v588
  %v633 = vsel %vm590, %v632, %v631
  %v634 = vperm.slane %v537, %v544
  %v635 = vperm.slane %v540, %v588
  %v636 = vsel %vm590, %v635, %v634
  %vm637 = vcmask 1041409
  %v638 = vsel %vm637, %v594, %v591
  %vm639 = vcmask 1042434
  %v640 = vsel %vm639, %v597, %v638
  %vm641 = vcmask 1043459
  %v642 = vsel %vm641, %v600, %v640
  %vm643 = vcmask 1044484
  %v644 = vsel %vm643, %v603, %v642
  %vm645 = vcmask 1045509
  %v646 = vsel %vm645, %v606, %v644
  %vm647 = vcmask 1046534
  %v648 = vsel %vm647, %v609, %v646
  %vm649 = vcmask 1047559
  %v650 = vsel %vm649, %v612, %v648
  %v651 = vsel %vm637, %v618, %v615
  %v652 = vsel %vm639, %v621, %v651
  %v653 = vsel %vm641, %v624, %v652
  %v654 = vsel %vm643, %v627, %v653
  %v655 = vsel %vm645, %v630, %v654
  %v656 = vsel %vm647, %v633, %v655
  %v657 = vsel %vm649, %v636, %v656
  %v660 = vsel %vm553, %v650, -1000000.0
  %v661 = vsel %vm554, %v657, -1000000.0
  %vm662 = vcmask 80896
  %v663 = vsel %vm662, %v660, -inf
  %664 = vmax.xlane.f32.xlu0 %v663
  %v665 = vpop.xlane.xlu0 %664
  %v666 = vsel %vm662, %v661, -inf
  %667 = vmax.xlane.f32.xlu0 %v666
  %v668 = vpop.xlane.xlu0 %667
  %v669 = vsub.f32 %v660, %v665
  %v670 = vsub.f32 %v661, %v668
  %v671 = vmul.f32 %v669, 1.442695
  %v672 = vpow.pop %v671
  %v673 = vmul.f32 %v670, 1.442695
  %v674 = vpow.pop %v673
  %v675 = vsel %vm662, %v672, 0.0
  %676 = vadd.xlane.f32.xlu0 %v675
  %v677 = vpop.xlane.xlu0 %676
  %v678 = vsel %vm662, %v674, 0.0
  %679 = vadd.xlane.f32.xlu0 %v678
  %v680 = vpop.xlane.xlu0 %679
  %v681 = vrcp.pop %v677
  %v682 = vmul.f32 %v677, %v681
  %v683 = vsub.f32 1.0, %v682
  %v684 = vmul.f32 %v681, %v683
  %v685 = vadd.f32 %v681, %v684
  %vm686 = vweird.f32 %v677
  %vm687 = vweird.f32 %v681
  %vm688 = vmor %vm686, %vm687
  %v689 = vsel %vm688, %v681, %v685
  %v690 = vand.u32 2147483647, %v677
  %vm691 = vcmp.eq.f32.partialorder %v690, 8.507059e+37
  %v692 = vand.u32 %v677, 2147483648
  %v693 = vor.u32 1.1754944e-38, %v692
  %v694 = vsel %vm691, %v693, %v689
  %v695 = vmul.f32 %v672, %v694
  %v696 = vrcp.pop %v680
  %v697 = vmul.f32 %v680, %v696
  %v698 = vsub.f32 1.0, %v697
  %v699 = vmul.f32 %v696, %v698
  %v700 = vadd.f32 %v696, %v699
  %vm701 = vweird.f32 %v680
  %vm702 = vweird.f32 %v696
  %vm703 = vmor %vm701, %vm702
  %v704 = vsel %vm703, %v696, %v700
  %v705 = vand.u32 2147483647, %v680
  %vm706 = vcmp.eq.f32.partialorder %v705, 8.507059e+37
  %v707 = vand.u32 %v680, 2147483648
  %v708 = vor.u32 1.1754944e-38, %v707
  %v709 = vsel %vm706, %v708, %v704
  %v710 = vmul.f32 %v674, %v709
  %v711 = vld [vmem:[%s2] sm:$0xff]
  %v712 = vld [vmem:[%s2 + $0x8] sm:$0x3]
  %v713 = vld [vmem:[%s2 + $0x10] sm:$0xff]
  %v714 = vld [vmem:[%s2 + $0x18] sm:$0x3]
  %v716 = vsel %vm662, %v695, 0
  %v719 = vsel %vm123, %v712, 0
  %721 = vmatpush.msra.mxu0 0.0
  %722 = vmatpush.msra.mxu0 0.0
  %723 = vmatpush.msra.mxu0 0.0
  %724 = vmatpush.msra.mxu0 0.0
  %725 = vmatpush.msra.mxu0 0.0
  %726 = vmatpush.msra.mxu0 0.0
  %727 = vmatpush.msra.mxu0 0.0
  %728 = vmatpush.msra.mxu0 0.0
  %729 = vmatpush.msra.mxu0 0.0
  %730 = vmatpush.msra.mxu0 0.0
  %731 = vmatpush.msra.mxu0 0.0
  %732 = vmatpush.msra.mxu0 0.0
  %733 = vmatpush.msra.mxu0 0.0
  %734 = vmatpush.msra.mxu0 0.0
  %735 = vmatpush.msra.mxu0 %v719
  %736 = vmatpush.msra.mxu0 %v711
  %737 = vmatmul.f32.gmra.mxu0 %v716
  %v738 = vpop.f32.mrf.mxu0
  %v739 = vadd.f32 0.0, %v738
  %740 = vdwg.mxu0
  %v742 = vsel %vm662, %v710, 0
  %v745 = vsel %vm123, %v714, 0
  %747 = vmatpush.msra.mxu0 0.0
  %748 = vmatpush.msra.mxu0 0.0
  %749 = vmatpush.msra.mxu0 0.0
  %750 = vmatpush.msra.mxu0 0.0
  %751 = vmatpush.msra.mxu0 0.0
  %752 = vmatpush.msra.mxu0 0.0
  %753 = vmatpush.msra.mxu0 0.0
  %754 = vmatpush.msra.mxu0 0.0
  %755 = vmatpush.msra.mxu0 0.0
  %756 = vmatpush.msra.mxu0 0.0
  %757 = vmatpush.msra.mxu0 0.0
  %758 = vmatpush.msra.mxu0 0.0
  %759 = vmatpush.msra.mxu0 0.0
  %760 = vmatpush.msra.mxu0 0.0
  %761 = vmatpush.msra.mxu0 %v745
  %762 = vmatpush.msra.mxu0 %v713
  %763 = vmatmul.f32.gmra.mxu0 %v742
  %v764 = vpop.f32.mrf.mxu0
  %v765 = vadd.f32 0.0, %v764
  %766 = vdwg.mxu0
  %vm767 = vcmask 31744
  %768 = vst.msk [vmem:[%s7] sm:$0xff] %vm767, %v739
  %769 = vst.msk [vmem:[%s7 + $0x8] sm:$0xff] %vm767, %v765
  // Predicated region
  $region30: #{tpu_custom_call.1} parent=0 // pred_check
    _
  $region31: #{tpu_custom_call.1} parent=0 // pred_check_branch
    %771 = sbr.rel (0) target = $region33
  $region32: #{tpu_custom_call.1} parent=0 // pred_region
    _
  $region33: #{tpu_custom_call.1} parent=0 // pred_fallthru
    _
  // Predicated region
  $region34: #{tpu_custom_call.1} parent=0 // pred_check
    _
  $region35: #{tpu_custom_call.1} parent=0 // pred_check_branch
    %773 = sbr.rel (0) target = $region37
  $region36: #{tpu_custom_call.1} parent=0 // pred_region
    _
  $region37: #{tpu_custom_call.1} parent=0 // pred_fallthru
    _

</llo_original>
